<compile_context>
chip_gen: v5e
topology: v5e:2x2
jax: 0.10.0
libtpu: 0.0.40
codegen_flags: <defaults>
</compile_context>

<pallas_src>
import jax
import jax.numpy as jnp
from jax.experimental import pallas as pl
from jax.experimental.pallas import tpu as pltpu

LN_EPS = 1e-5


def _layer(h, w_ref, p_ref):
    """relu(h @ W + b) -> LayerNorm (two-pass stats) -> *gamma + beta.

    Matmul operands take w_ref's dtype (bf16 for MXU throughput); all
    elementwise / LayerNorm math stays in f32.
    """
    p = p_ref[...]                                   # (3, out) f32: [b; gamma; beta]
    b, g, beta = p[0:1, :], p[1:2, :], p[2:3, :]
    y = jnp.dot(h.astype(w_ref.dtype), w_ref[...],
                preferred_element_type=jnp.float32) + b
    y = jnp.maximum(y, 0.0)
    mean = jnp.mean(y, axis=-1, keepdims=True)
    c = y - mean
    var = jnp.mean(c * c, axis=-1, keepdims=True)
    inv = jax.lax.rsqrt(var + LN_EPS)                # EUP
    return c * inv * g + beta


def critic_kernel(x_ref, w1_ref, w2_ref, w3_ref,
                  p1_ref, p2_ref, p3_ref, w4b_ref, o_ref):
    h = x_ref[...].astype(jnp.float32)               # (tb, state_dim)
    h = _layer(h, w1_ref, p1_ref)                    # (tb, 128)
    h = _layer(h, w2_ref, p2_ref)                    # (tb, 64)
    h = _layer(h, w3_ref, p3_ref)                    # (tb, 32)

    # fc4 (32 -> 1), lane-dense and transpose-free: contract the feature axes
    # of w4 (1, 32) and h (tb, 32) directly -> (1, tb); batch lands on lanes.
    w4b = w4b_ref[...]                               # (1, 33) f32 = [w4 | b4]
    row = jax.lax.dot_general(
        w4b[:, :32], h,
        dimension_numbers=(((1,), (1,)), ((), ())),
        preferred_element_type=jnp.float32) + w4b[:, 32:33]
    o_ref[...] = row.reshape(o_ref.shape).astype(o_ref.dtype)   # (1, 1, tb)


def _round_up(v, m):
    return -(-v // m) * m


def _choose_tiling(B, requested=None):
    """Sublane-aligned batch tile + padded batch size.

    Keeps >= 2 grid steps (and an even step count) when the batch allows so
    the 'parallel' axis shards evenly across v7x's two TensorCores.  Larger
    caps (1024/2048) are worth sweeping for B >= 64K; the per-step VMEM
    footprint (~tb x (state_dim + 224) x 4B + ~60KB resident weights) stays
    tiny either way.
    """
    cap = max(8, _round_up(requested or 512, 8))
    n = max(1, pl.cdiv(B, cap))
    if n == 1 and B >= 16:
        n = 2                          # >=2 steps so megacore has work to split
    elif n > 1 and n % 2 == 1:
        n += 1                         # even split across the two v7x TCs
    tb = max(8, _round_up(pl.cdiv(B, n), 8))
    n = pl.cdiv(B, tb)                 # alignment may have reduced step count
    return tb, n, tb * n


def critic_forward(x, params, *, tb=None, use_bf16=True):
    """x: (B, state_dim) float32.  Returns (B, 1) float32."""
    B, state_dim = x.shape
    (w1, b1, g1, be1, w2, b2, g2, be2, w3, b3, g3, be3, w4, b4) = params

    tb, num_tiles, padded_B = _choose_tiling(B, tb)
    if padded_B != B:
        # Padded rows compute independently (per-row LayerNorm) and are
        # sliced away below, so zero-padding is semantics-preserving.
        x = jnp.pad(x, ((0, padded_B - B), (0, 0)))

    dot_dtype = jnp.bfloat16 if use_bf16 else jnp.float32
    w1c, w2c, w3c = (w.astype(dot_dtype) for w in (w1, w2, w3))

    # Pack tiny per-layer params -> fewer DMA descriptors / padded VMEM tiles.
    p1 = jnp.concatenate([b1, g1, be1], axis=0)                 # (3, 128) f32
    p2 = jnp.concatenate([b2, g2, be2], axis=0)                 # (3, 64)  f32
    p3 = jnp.concatenate([b3, g3, be3], axis=0)                 # (3, 32)  f32
    w4b = jnp.concatenate([w4.reshape(1, -1), b4.reshape(1, 1)], axis=1)  # (1, 33)

    def resident_spec(arr):
        nd = arr.ndim
        # Constant block index -> parameter DMA'd once, stays resident in VMEM.
        # TODO(synk): mark these pl.Buffered(1) (single-buffered) once
        # pipeline_mode on resident specs is confirmed on the target jax.
        return pl.BlockSpec(arr.shape, lambda i, _nd=nd: (0,) * _nd)

    weights = (w1c, w2c, w3c, p1, p2, p3, w4b)
    in_specs = [pl.BlockSpec((tb, state_dim), lambda i: (i, 0))]
    in_specs += [resident_spec(p) for p in weights]

    out = pl.pallas_call(
        critic_kernel,
        out_shape=jax.ShapeDtypeStruct((num_tiles, 1, tb), jnp.float32),
        grid_spec=pltpu.PrefetchScalarGridSpec(
            num_scalar_prefetch=0,
            grid=(num_tiles,),
            in_specs=in_specs,
            out_specs=pl.BlockSpec((1, 1, tb), lambda i: (i, 0, 0)),
        ),
        compiler_params=pltpu.CompilerParams(
            dimension_semantics=("parallel",)),
    )(x, *weights)

    return out.reshape(padded_B, 1)[:B]


def init_params(key, state_dim):
    """Deterministic synthetic init matching CriticNetwork(state_dim) shapes."""
    dims = [(state_dim, 128), (128, 64), (64, 32), (32, 1)]
    keys = jax.random.split(key, len(dims) * 2)
    params = []
    for li, (fan_in, fan_out) in enumerate(dims):
        bound = 1.0 / jnp.sqrt(fan_in)
        w = jax.random.uniform(keys[2 * li], (fan_in, fan_out),
                               minval=-bound, maxval=bound, dtype=jnp.float32)
        b = jax.random.uniform(keys[2 * li + 1], (1, fan_out),
                               minval=-bound, maxval=bound, dtype=jnp.float32)
        params.append((w, b))
    (w1, b1), (w2, b2), (w3, b3), (w4, b4) = params
    # LayerNorm affine: gamma=1, beta=0 (PyTorch default init).
    g1, be1 = jnp.ones((1, 128), jnp.float32), jnp.zeros((1, 128), jnp.float32)
    g2, be2 = jnp.ones((1, 64), jnp.float32), jnp.zeros((1, 64), jnp.float32)
    g3, be3 = jnp.ones((1, 32), jnp.float32), jnp.zeros((1, 32), jnp.float32)
    return (w1, b1, g1, be1, w2, b2, g2, be2, w3, b3, g3, be3, w4, b4)


def critic_reference(x, params, dot_dtype=jnp.float32):
    """Pure-JAX reference mirroring the PyTorch forward.  `dot_dtype` lets the
    hidden-layer matmul operands be rounded the same way as the kernel."""
    (w1, b1, g1, be1, w2, b2, g2, be2, w3, b3, g3, be3, w4, b4) = params

    def layer(h, w, b, g, be):
        y = jnp.dot(h.astype(dot_dtype), w.astype(dot_dtype),
                    preferred_element_type=jnp.float32) + b
        y = jnp.maximum(y, 0.0)
        mean = jnp.mean(y, axis=-1, keepdims=True)
        var = jnp.mean((y - mean) ** 2, axis=-1, keepdims=True)
        return (y - mean) / jnp.sqrt(var + LN_EPS) * g + be

    h = layer(x, w1, b1, g1, be1)
    h = layer(h, w2, b2, g2, be2)
    h = layer(h, w3, b3, g3, be3)
    return h @ w4 + b4                      # final projection kept in f32


if __name__ == "__main__":
    key = jax.random.PRNGKey(0)
    k_x, k_p = jax.random.split(key)

    batch, state_dim = 64, 32               # small demo; tiling -> tb=32, grid=2
    x = jax.random.normal(k_x, (batch, state_dim), dtype=jnp.float32)
    params = init_params(k_p, state_dim)

    # f32 path: must match the pure-JAX reference tightly.
    out_f32 = jax.block_until_ready(critic_forward(x, params, use_bf16=False))
    ref_f32 = critic_reference(x, params, dot_dtype=jnp.float32)
    assert out_f32.shape == (batch, 1)
    assert jnp.allclose(out_f32, ref_f32, atol=1e-4, rtol=1e-4), "f32 mismatch"

    # bf16-operand path (MXU throughput on v5e/v6e/v7x): compare against a
    # reference that rounds its matmul operands the same way, and loosely
    # against the f32 reference.
    out_bf16 = jax.block_until_ready(critic_forward(x, params, use_bf16=True))
    ref_bf16 = critic_reference(x, params, dot_dtype=jnp.bfloat16)
    assert jnp.allclose(out_bf16, ref_bf16, atol=1e-2, rtol=1e-2), "bf16 mismatch"
    assert jnp.allclose(out_bf16, ref_f32, atol=1e-1, rtol=1e-1), "bf16 drift"

    print("KERNEL_OK")
</pallas_src>

<mosaic_0001>
module attributes {stable_mosaic.version = 11 : i64} {
  func.func @critic_kernel(%arg0: i32, %arg1: memref<32x32xf32, #tpu.memory_space<vmem>>, %arg2: memref<32x128xf32, #tpu.memory_space<vmem>>, %arg3: memref<128x64xf32, #tpu.memory_space<vmem>>, %arg4: memref<64x32xf32, #tpu.memory_space<vmem>>, %arg5: memref<3x128xf32, #tpu.memory_space<vmem>>, %arg6: memref<3x64xf32, #tpu.memory_space<vmem>>, %arg7: memref<3x32xf32, #tpu.memory_space<vmem>>, %arg8: memref<1x33xf32, #tpu.memory_space<vmem>>, %arg9: memref<1x1x32xf32, #tpu.memory_space<vmem>>) attributes {dimension_semantics = [#tpu.dimension_semantics<parallel>], iteration_bounds = array<i64: 2>, scalar_prefetch = 0 : i64, scratch_operands = 0 : i64, tpu.core_type = #tpu.core_type<tc>, window_params = [{transform_indices = @transform_0, window_bounds = array<i64: 32, 32>}, {pipeline_mode = #tpu.pipeline_mode<synchronous>, transform_indices = @transform_1, window_bounds = array<i64: 32, 128>}, {pipeline_mode = #tpu.pipeline_mode<synchronous>, transform_indices = @transform_2, window_bounds = array<i64: 128, 64>}, {pipeline_mode = #tpu.pipeline_mode<synchronous>, transform_indices = @transform_3, window_bounds = array<i64: 64, 32>}, {pipeline_mode = #tpu.pipeline_mode<synchronous>, transform_indices = @transform_4, window_bounds = array<i64: 3, 128>}, {pipeline_mode = #tpu.pipeline_mode<synchronous>, transform_indices = @transform_5, window_bounds = array<i64: 3, 64>}, {pipeline_mode = #tpu.pipeline_mode<synchronous>, transform_indices = @transform_6, window_bounds = array<i64: 3, 32>}, {pipeline_mode = #tpu.pipeline_mode<synchronous>, transform_indices = @transform_7, window_bounds = array<i64: 1, 33>}, {transform_indices = @transform_8, window_bounds = array<i64: 1, 1, 32>}]} {
    %c0 = arith.constant 0 : index
    %c0_0 = arith.constant 0 : index
    %0 = vector.load %arg1[%c0, %c0_0] : memref<32x32xf32, #tpu.memory_space<vmem>>, vector<32x32xf32>
    %c0_1 = arith.constant 0 : index
    %c0_2 = arith.constant 0 : index
    %1 = vector.load %arg5[%c0_1, %c0_2] : memref<3x128xf32, #tpu.memory_space<vmem>>, vector<3x128xf32>
    %2 = vector.extract_strided_slice %1 {offsets = [0, 0], sizes = [1, 128], strides = [1, 1]} : vector<3x128xf32> to vector<1x128xf32>
    %3 = vector.extract_strided_slice %1 {offsets = [1, 0], sizes = [1, 128], strides = [1, 1]} : vector<3x128xf32> to vector<1x128xf32>
    %4 = vector.extract_strided_slice %1 {offsets = [2, 0], sizes = [1, 128], strides = [1, 1]} : vector<3x128xf32> to vector<1x128xf32>
    %c0_3 = arith.constant 0 : index
    %c0_4 = arith.constant 0 : index
    %5 = vector.load %arg2[%c0_3, %c0_4] : memref<32x128xf32, #tpu.memory_space<vmem>>, vector<32x128xf32>
    %cst = arith.constant dense<0.000000e+00> : vector<32x128xf32>
    %6 = tpu.matmul %0, %5, %cst {dimension_numbers = #tpu.dot_dimension_numbers<[1], [0], [0], [1], [0, 0, 1, 1], [], []>} : vector<32x32xf32>, vector<32x128xf32>, vector<32x128xf32> -> vector<32x128xf32>
    %7 = vector.broadcast %2 : vector<1x128xf32> to vector<32x128xf32>
    %8 = arith.addf %6, %7 : vector<32x128xf32>
    %cst_5 = arith.constant 0.000000e+00 : f32
    %9 = vector.broadcast %cst_5 : f32 to vector<32x128xf32>
    %10 = arith.maximumf %8, %9 : vector<32x128xf32>
    %cst_6 = arith.constant dense<0.000000e+00> : vector<32xf32>
    %11 = vector.multi_reduction <add>, %10, %cst_6 [1] : vector<32x128xf32> to vector<32xf32>
    %12 = vector.shape_cast %11 : vector<32xf32> to vector<32x1xf32>
    %cst_7 = arith.constant 1.280000e+02 : f32
    %13 = vector.broadcast %cst_7 : f32 to vector<32x1xf32>
    %14 = arith.divf %12, %13 : vector<32x1xf32>
    %15 = vector.broadcast %14 : vector<32x1xf32> to vector<32x128xf32>
    %16 = arith.subf %10, %15 : vector<32x128xf32>
    %17 = arith.mulf %16, %16 : vector<32x128xf32>
    %cst_8 = arith.constant dense<0.000000e+00> : vector<32xf32>
    %18 = vector.multi_reduction <add>, %17, %cst_8 [1] : vector<32x128xf32> to vector<32xf32>
    %19 = vector.shape_cast %18 : vector<32xf32> to vector<32x1xf32>
    %cst_9 = arith.constant 1.280000e+02 : f32
    %20 = vector.broadcast %cst_9 : f32 to vector<32x1xf32>
    %21 = arith.divf %19, %20 : vector<32x1xf32>
    %cst_10 = arith.constant 9.99999974E-6 : f32
    %22 = vector.broadcast %cst_10 : f32 to vector<32x1xf32>
    %23 = arith.addf %21, %22 : vector<32x1xf32>
    %24 = math.rsqrt %23 : vector<32x1xf32>
    %25 = vector.broadcast %24 : vector<32x1xf32> to vector<32x128xf32>
    %26 = arith.mulf %16, %25 : vector<32x128xf32>
    %27 = vector.broadcast %3 : vector<1x128xf32> to vector<32x128xf32>
    %28 = arith.mulf %26, %27 : vector<32x128xf32>
    %29 = vector.broadcast %4 : vector<1x128xf32> to vector<32x128xf32>
    %30 = arith.addf %28, %29 : vector<32x128xf32>
    %c0_11 = arith.constant 0 : index
    %c0_12 = arith.constant 0 : index
    %31 = vector.load %arg6[%c0_11, %c0_12] : memref<3x64xf32, #tpu.memory_space<vmem>>, vector<3x64xf32>
    %32 = vector.extract_strided_slice %31 {offsets = [0, 0], sizes = [1, 64], strides = [1, 1]} : vector<3x64xf32> to vector<1x64xf32>
    %33 = vector.extract_strided_slice %31 {offsets = [1, 0], sizes = [1, 64], strides = [1, 1]} : vector<3x64xf32> to vector<1x64xf32>
    %34 = vector.extract_strided_slice %31 {offsets = [2, 0], sizes = [1, 64], strides = [1, 1]} : vector<3x64xf32> to vector<1x64xf32>
    %c0_13 = arith.constant 0 : index
    %c0_14 = arith.constant 0 : index
    %35 = vector.load %arg3[%c0_13, %c0_14] : memref<128x64xf32, #tpu.memory_space<vmem>>, vector<128x64xf32>
    %cst_15 = arith.constant dense<0.000000e+00> : vector<32x64xf32>
    %36 = tpu.matmul %30, %35, %cst_15 {dimension_numbers = #tpu.dot_dimension_numbers<[1], [0], [0], [1], [0, 0, 1, 1], [], []>} : vector<32x128xf32>, vector<128x64xf32>, vector<32x64xf32> -> vector<32x64xf32>
    %37 = vector.broadcast %32 : vector<1x64xf32> to vector<32x64xf32>
    %38 = arith.addf %36, %37 : vector<32x64xf32>
    %cst_16 = arith.constant 0.000000e+00 : f32
    %39 = vector.broadcast %cst_16 : f32 to vector<32x64xf32>
    %40 = arith.maximumf %38, %39 : vector<32x64xf32>
    %cst_17 = arith.constant dense<0.000000e+00> : vector<32xf32>
    %41 = vector.multi_reduction <add>, %40, %cst_17 [1] : vector<32x64xf32> to vector<32xf32>
    %42 = vector.shape_cast %41 : vector<32xf32> to vector<32x1xf32>
    %cst_18 = arith.constant 6.400000e+01 : f32
    %43 = vector.broadcast %cst_18 : f32 to vector<32x1xf32>
    %44 = arith.divf %42, %43 : vector<32x1xf32>
    %45 = vector.broadcast %44 : vector<32x1xf32> to vector<32x64xf32>
    %46 = arith.subf %40, %45 : vector<32x64xf32>
    %47 = arith.mulf %46, %46 : vector<32x64xf32>
    %cst_19 = arith.constant dense<0.000000e+00> : vector<32xf32>
    %48 = vector.multi_reduction <add>, %47, %cst_19 [1] : vector<32x64xf32> to vector<32xf32>
    %49 = vector.shape_cast %48 : vector<32xf32> to vector<32x1xf32>
    %cst_20 = arith.constant 6.400000e+01 : f32
    %50 = vector.broadcast %cst_20 : f32 to vector<32x1xf32>
    %51 = arith.divf %49, %50 : vector<32x1xf32>
    %cst_21 = arith.constant 9.99999974E-6 : f32
    %52 = vector.broadcast %cst_21 : f32 to vector<32x1xf32>
    %53 = arith.addf %51, %52 : vector<32x1xf32>
    %54 = math.rsqrt %53 : vector<32x1xf32>
    %55 = vector.broadcast %54 : vector<32x1xf32> to vector<32x64xf32>
    %56 = arith.mulf %46, %55 : vector<32x64xf32>
    %57 = vector.broadcast %33 : vector<1x64xf32> to vector<32x64xf32>
    %58 = arith.mulf %56, %57 : vector<32x64xf32>
    %59 = vector.broadcast %34 : vector<1x64xf32> to vector<32x64xf32>
    %60 = arith.addf %58, %59 : vector<32x64xf32>
    %c0_22 = arith.constant 0 : index
    %c0_23 = arith.constant 0 : index
    %61 = vector.load %arg7[%c0_22, %c0_23] : memref<3x32xf32, #tpu.memory_space<vmem>>, vector<3x32xf32>
    %62 = vector.extract_strided_slice %61 {offsets = [0, 0], sizes = [1, 32], strides = [1, 1]} : vector<3x32xf32> to vector<1x32xf32>
    %63 = vector.extract_strided_slice %61 {offsets = [1, 0], sizes = [1, 32], strides = [1, 1]} : vector<3x32xf32> to vector<1x32xf32>
    %64 = vector.extract_strided_slice %61 {offsets = [2, 0], sizes = [1, 32], strides = [1, 1]} : vector<3x32xf32> to vector<1x32xf32>
    %c0_24 = arith.constant 0 : index
    %c0_25 = arith.constant 0 : index
    %65 = vector.load %arg4[%c0_24, %c0_25] : memref<64x32xf32, #tpu.memory_space<vmem>>, vector<64x32xf32>
    %cst_26 = arith.constant dense<0.000000e+00> : vector<32x32xf32>
    %66 = tpu.matmul %60, %65, %cst_26 {dimension_numbers = #tpu.dot_dimension_numbers<[1], [0], [0], [1], [0, 0, 1, 1], [], []>} : vector<32x64xf32>, vector<64x32xf32>, vector<32x32xf32> -> vector<32x32xf32>
    %67 = vector.broadcast %62 : vector<1x32xf32> to vector<32x32xf32>
    %68 = arith.addf %66, %67 : vector<32x32xf32>
    %cst_27 = arith.constant 0.000000e+00 : f32
    %69 = vector.broadcast %cst_27 : f32 to vector<32x32xf32>
    %70 = arith.maximumf %68, %69 : vector<32x32xf32>
    %cst_28 = arith.constant dense<0.000000e+00> : vector<32xf32>
    %71 = vector.multi_reduction <add>, %70, %cst_28 [1] : vector<32x32xf32> to vector<32xf32>
    %72 = vector.shape_cast %71 : vector<32xf32> to vector<32x1xf32>
    %cst_29 = arith.constant 3.200000e+01 : f32
    %73 = vector.broadcast %cst_29 : f32 to vector<32x1xf32>
    %74 = arith.divf %72, %73 : vector<32x1xf32>
    %75 = vector.broadcast %74 : vector<32x1xf32> to vector<32x32xf32>
    %76 = arith.subf %70, %75 : vector<32x32xf32>
    %77 = arith.mulf %76, %76 : vector<32x32xf32>
    %cst_30 = arith.constant dense<0.000000e+00> : vector<32xf32>
    %78 = vector.multi_reduction <add>, %77, %cst_30 [1] : vector<32x32xf32> to vector<32xf32>
    %79 = vector.shape_cast %78 : vector<32xf32> to vector<32x1xf32>
    %cst_31 = arith.constant 3.200000e+01 : f32
    %80 = vector.broadcast %cst_31 : f32 to vector<32x1xf32>
    %81 = arith.divf %79, %80 : vector<32x1xf32>
    %cst_32 = arith.constant 9.99999974E-6 : f32
    %82 = vector.broadcast %cst_32 : f32 to vector<32x1xf32>
    %83 = arith.addf %81, %82 : vector<32x1xf32>
    %84 = math.rsqrt %83 : vector<32x1xf32>
    %85 = vector.broadcast %84 : vector<32x1xf32> to vector<32x32xf32>
    %86 = arith.mulf %76, %85 : vector<32x32xf32>
    %87 = vector.broadcast %63 : vector<1x32xf32> to vector<32x32xf32>
    %88 = arith.mulf %86, %87 : vector<32x32xf32>
    %89 = vector.broadcast %64 : vector<1x32xf32> to vector<32x32xf32>
    %90 = arith.addf %88, %89 : vector<32x32xf32>
    %c0_33 = arith.constant 0 : index
    %c0_34 = arith.constant 0 : index
    %91 = vector.load %arg8[%c0_33, %c0_34] : memref<1x33xf32, #tpu.memory_space<vmem>>, vector<1x33xf32>
    %92 = vector.extract_strided_slice %91 {offsets = [0, 0], sizes = [1, 32], strides = [1, 1]} : vector<1x33xf32> to vector<1x32xf32>
    %cst_35 = arith.constant dense<0.000000e+00> : vector<1x32xf32>
    %93 = tpu.matmul %92, %90, %cst_35 {dimension_numbers = #tpu.dot_dimension_numbers<[1], [1], [0], [0], [0, 0, 1, 0], [], []>} : vector<1x32xf32>, vector<32x32xf32>, vector<1x32xf32> -> vector<1x32xf32>
    %94 = vector.extract_strided_slice %91 {offsets = [0, 32], sizes = [1, 1], strides = [1, 1]} : vector<1x33xf32> to vector<1x1xf32>
    %95 = vector.broadcast %94 : vector<1x1xf32> to vector<1x32xf32>
    %96 = arith.addf %93, %95 : vector<1x32xf32>
    %97 = vector.shape_cast %96 : vector<1x32xf32> to vector<1x1x32xf32>
    %c0_36 = arith.constant 0 : index
    %c0_37 = arith.constant 0 : index
    %c0_38 = arith.constant 0 : index
    %98 = vector.load %arg9[%c0_36, %c0_37, %c0_38] : memref<1x1x32xf32, #tpu.memory_space<vmem>>, vector<1x1x32xf32>
    tpu.vector_store %arg9[%c0_36, %c0_37, %c0_38], %97 {strides = array<i32>} : memref<1x1x32xf32, #tpu.memory_space<vmem>>, vector<1x1x32xf32>,
    return
  }
  func.func @transform_0(%arg0: i32) -> (i32, i32) {
    %c0_i32 = arith.constant 0 : i32
    %c0_i32_0 = arith.constant 0 : i32
    return %arg0, %c0_i32 : i32, i32
  }
  func.func @transform_1(%arg0: i32) -> (i32, i32) {
    %c0_i32 = arith.constant 0 : i32
    %c0_i32_0 = arith.constant 0 : i32
    %c0_i32_1 = arith.constant 0 : i32
    return %c0_i32, %c0_i32_0 : i32, i32
  }
  func.func @transform_2(%arg0: i32) -> (i32, i32) {
    %c0_i32 = arith.constant 0 : i32
    %c0_i32_0 = arith.constant 0 : i32
    %c0_i32_1 = arith.constant 0 : i32
    return %c0_i32, %c0_i32_0 : i32, i32
  }
  func.func @transform_3(%arg0: i32) -> (i32, i32) {
    %c0_i32 = arith.constant 0 : i32
    %c0_i32_0 = arith.constant 0 : i32
    %c0_i32_1 = arith.constant 0 : i32
    return %c0_i32, %c0_i32_0 : i32, i32
  }
  func.func @transform_4(%arg0: i32) -> (i32, i32) {
    %c0_i32 = arith.constant 0 : i32
    %c0_i32_0 = arith.constant 0 : i32
    %c0_i32_1 = arith.constant 0 : i32
    return %c0_i32, %c0_i32_0 : i32, i32
  }
  func.func @transform_5(%arg0: i32) -> (i32, i32) {
    %c0_i32 = arith.constant 0 : i32
    %c0_i32_0 = arith.constant 0 : i32
    %c0_i32_1 = arith.constant 0 : i32
    return %c0_i32, %c0_i32_0 : i32, i32
  }
  func.func @transform_6(%arg0: i32) -> (i32, i32) {
    %c0_i32 = arith.constant 0 : i32
    %c0_i32_0 = arith.constant 0 : i32
    %c0_i32_1 = arith.constant 0 : i32
    return %c0_i32, %c0_i32_0 : i32, i32
  }
  func.func @transform_7(%arg0: i32) -> (i32, i32) {
    %c0_i32 = arith.constant 0 : i32
    %c0_i32_0 = arith.constant 0 : i32
    %c0_i32_1 = arith.constant 0 : i32
    return %c0_i32, %c0_i32_0 : i32, i32
  }
  func.func @transform_8(%arg0: i32) -> (i32, i32, i32) {
    %c0_i32 = arith.constant 0 : i32
    %c0_i32_0 = arith.constant 0 : i32
    %c0_i32_1 = arith.constant 0 : i32
    return %arg0, %c0_i32, %c0_i32_0 : i32, i32, i32
  }
}

</mosaic_0001>

<llo_original>
// kernel: tpu_custom_call.1
$region0: #{tpu_custom_call.1}
  #allocation0 [shape = 'u32[]', space=smem, size = 0x4, offset = 0x4, fixed_abs, tag = 'smem constant byte address 0x4 - core index']
  #allocation1 [shape = 'u32[72,128]{1,0:T(1,128)}', space=vmem, size = 0x9000, scoped, tag = 'internal scratch']
  %s0 = inlined_call_operand.vmem [shape: f32[64,32], index: 0, kind: input, shape index: {}]
  %s1 = inlined_call_operand.vmem [shape: f32[32,128], index: 1, kind: input, shape index: {}]
  %s2 = inlined_call_operand.vmem [shape: f32[128,64], index: 2, kind: input, shape index: {}]
  %s3 = inlined_call_operand.vmem [shape: f32[64,32], index: 3, kind: input, shape index: {}]
  %s4 = inlined_call_operand.vmem [shape: f32[3,128], index: 4, kind: input, shape index: {}]
  %s5 = inlined_call_operand.vmem [shape: f32[3,64], index: 5, kind: input, shape index: {}]
  %s6 = inlined_call_operand.vmem [shape: f32[3,32], index: 6, kind: input, shape index: {}]
  %s7 = inlined_call_operand.vmem [shape: f32[1,33], index: 7, kind: input, shape index: {}]
  %s8 = inlined_call_operand.hbm [shape: f32[2,1,32], index: 8, kind: output, shape index: {}]
  %s9 = sld [smem:[#allocation0]]
  $region65: #{tpu_custom_call.1} parent=0
    _
  %s11 = ssub.s32 1, %s9
  %s12 = scalar_select 0, %s11, %s9
  $region1: #{tpu_custom_call.1} parent=0
    #allocation2 [shape = 'u8[1024]{0}', space=vmem, size = 0x400, scoped, tag = 'output window, operand 0']
    #allocation3 [shape = 's32[2]{0}', space=sflag, size = 0x8, scoped, tag = 'scoped memory for tpu_custom_call.1']
    %13 = vsyncpa [#allocation3], 0
    %s14 = scalar_lea.sflag [#allocation3], 1
    %15 = vsyncpa %s14, 0
    loop: start=0, step=1, limit=4
    $region2: #{tpu_custom_call.1} parent=1 // loop_pre_header
      _
    $region3: #{tpu_custom_call.1} parent=1 // loop_header
      %s17 = sphi 0, %s21
      %p18 = scmp.ge.s32.totalorder %s17, 4
      %s27 = sphi 0, %s29
      %s30 = sphi 0, %s27
      %s31 = sphi 0, %s30
      %s47 = sphi 0, %s31
      %s51 = sphi 0, %s51
      %s53 = sphi 0, %s51
      %s54 = sphi 0, %s53
      %s68 = sphi 0, %s54
      %s72 = sphi 0, %s72
      %s74 = sphi 0, %s72
      %s75 = sphi 0, %s74
      %s89 = sphi 0, %s75
      %s93 = sphi 0, %s93
      %s95 = sphi 0, %s93
      %s96 = sphi 0, %s95
      %s110 = sphi 0, %s96
      %s114 = sphi 0, %s114
      %s116 = sphi 0, %s114
      %s117 = sphi 0, %s116
      %s131 = sphi 0, %s117
      %s135 = sphi 0, %s135
      %s137 = sphi 0, %s135
      %s138 = sphi 0, %s137
      %s152 = sphi 0, %s138
      %s156 = sphi 0, %s156
      %s158 = sphi 0, %s156
      %s159 = sphi 0, %s158
      %s173 = sphi 0, %s159
      %s177 = sphi 0, %s177
      %s179 = sphi 0, %s177
      %s180 = sphi 0, %s179
      %s194 = sphi 0, %s180
      %s200 = sphi 0, %s202
      %s203 = sphi 0, %s200
      %s204 = sphi 0, %s203
      %s220 = sphi 0, %s204
    $region4: #{tpu_custom_call.1} parent=1 // loop_header_branch
      %20 = sbr.rel (%p18) target = $region8
    $region5: #{tpu_custom_call.1} parent=1 // loop_body
      %s22 = ssub.s32 %s17, 1
      %s23 = ssub.s32 %s17, 2
      %s24 = sadd.s32 %s17, 1
      %s25 = ssub.s32 %s17, %s24
      %p26 = scmp.eq.s32.totalorder %s25, 0
      %s28 = sadd.s32 %s27, 1
      %s29 = scalar_select %p26, %s27, %s28
      %p32 = pneg %p26
      %p33 = scmp.eq.s32.totalorder %s17, 1
      %p34 = por %p32, %p33
      %p35 = scmp.ne.s32.totalorder %s27, %s30
      %p36 = scmp.eq.s32.totalorder %s17, 0
      %p37 = por %p35, %p36
      %p38 = scmp.ne.s32.totalorder %s27, %s30
      %p39 = scmp.eq.s32.totalorder %s22, 1
      %p40 = por %p38, %p39
      %p41 = scmp.ne.s32.totalorder %s30, %s31
      %p42 = scmp.eq.s32.totalorder %s22, 0
      %p43 = por %p41, %p42
      %p44 = scmp.ne.s32.totalorder %s30, %s31
      %p45 = scmp.eq.s32.totalorder %s23, 1
      %p46 = por %p44, %p45
      %p48 = scmp.ne.s32.totalorder %s31, %s47
      %p49 = scmp.eq.s32.totalorder %s23, 0
      %p50 = por %p48, %p49
      %s52 = sadd.s32 %s51, 1
      %p55 = scmp.eq.s32.totalorder %s17, 1
      %p56 = scmp.ne.s32.totalorder %s51, %s53
      %p57 = scmp.eq.s32.totalorder %s17, 0
      %p58 = por %p56, %p57
      %p59 = scmp.ne.s32.totalorder %s51, %s53
      %p60 = scmp.eq.s32.totalorder %s22, 1
      %p61 = por %p59, %p60
      %p62 = scmp.ne.s32.totalorder %s53, %s54
      %p63 = scmp.eq.s32.totalorder %s22, 0
      %p64 = por %p62, %p63
      %p65 = scmp.ne.s32.totalorder %s53, %s54
      %p66 = scmp.eq.s32.totalorder %s23, 1
      %p67 = por %p65, %p66
      %p69 = scmp.ne.s32.totalorder %s54, %s68
      %p70 = scmp.eq.s32.totalorder %s23, 0
      %p71 = por %p69, %p70
      %s73 = sadd.s32 %s72, 1
      %p76 = scmp.eq.s32.totalorder %s17, 1
      %p77 = scmp.ne.s32.totalorder %s72, %s74
      %p78 = scmp.eq.s32.totalorder %s17, 0
      %p79 = por %p77, %p78
      %p80 = scmp.ne.s32.totalorder %s72, %s74
      %p81 = scmp.eq.s32.totalorder %s22, 1
      %p82 = por %p80, %p81
      %p83 = scmp.ne.s32.totalorder %s74, %s75
      %p84 = scmp.eq.s32.totalorder %s22, 0
      %p85 = por %p83, %p84
      %p86 = scmp.ne.s32.totalorder %s74, %s75
      %p87 = scmp.eq.s32.totalorder %s23, 1
      %p88 = por %p86, %p87
      %p90 = scmp.ne.s32.totalorder %s75, %s89
      %p91 = scmp.eq.s32.totalorder %s23, 0
      %p92 = por %p90, %p91
      %s94 = sadd.s32 %s93, 1
      %p97 = scmp.eq.s32.totalorder %s17, 1
      %p98 = scmp.ne.s32.totalorder %s93, %s95
      %p99 = scmp.eq.s32.totalorder %s17, 0
      %p100 = por %p98, %p99
      %p101 = scmp.ne.s32.totalorder %s93, %s95
      %p102 = scmp.eq.s32.totalorder %s22, 1
      %p103 = por %p101, %p102
      %p104 = scmp.ne.s32.totalorder %s95, %s96
      %p105 = scmp.eq.s32.totalorder %s22, 0
      %p106 = por %p104, %p105
      %p107 = scmp.ne.s32.totalorder %s95, %s96
      %p108 = scmp.eq.s32.totalorder %s23, 1
      %p109 = por %p107, %p108
      %p111 = scmp.ne.s32.totalorder %s96, %s110
      %p112 = scmp.eq.s32.totalorder %s23, 0
      %p113 = por %p111, %p112
      %s115 = sadd.s32 %s114, 1
      %p118 = scmp.eq.s32.totalorder %s17, 1
      %p119 = scmp.ne.s32.totalorder %s114, %s116
      %p120 = scmp.eq.s32.totalorder %s17, 0
      %p121 = por %p119, %p120
      %p122 = scmp.ne.s32.totalorder %s114, %s116
      %p123 = scmp.eq.s32.totalorder %s22, 1
      %p124 = por %p122, %p123
      %p125 = scmp.ne.s32.totalorder %s116, %s117
      %p126 = scmp.eq.s32.totalorder %s22, 0
      %p127 = por %p125, %p126
      %p128 = scmp.ne.s32.totalorder %s116, %s117
      %p129 = scmp.eq.s32.totalorder %s23, 1
      %p130 = por %p128, %p129
      %p132 = scmp.ne.s32.totalorder %s117, %s131
      %p133 = scmp.eq.s32.totalorder %s23, 0
      %p134 = por %p132, %p133
      %s136 = sadd.s32 %s135, 1
      %p139 = scmp.eq.s32.totalorder %s17, 1
      %p140 = scmp.ne.s32.totalorder %s135, %s137
      %p141 = scmp.eq.s32.totalorder %s17, 0
      %p142 = por %p140, %p141
      %p143 = scmp.ne.s32.totalorder %s135, %s137
      %p144 = scmp.eq.s32.totalorder %s22, 1
      %p145 = por %p143, %p144
      %p146 = scmp.ne.s32.totalorder %s137, %s138
      %p147 = scmp.eq.s32.totalorder %s22, 0
      %p148 = por %p146, %p147
      %p149 = scmp.ne.s32.totalorder %s137, %s138
      %p150 = scmp.eq.s32.totalorder %s23, 1
      %p151 = por %p149, %p150
      %p153 = scmp.ne.s32.totalorder %s138, %s152
      %p154 = scmp.eq.s32.totalorder %s23, 0
      %p155 = por %p153, %p154
      %s157 = sadd.s32 %s156, 1
      %p160 = scmp.eq.s32.totalorder %s17, 1
      %p161 = scmp.ne.s32.totalorder %s156, %s158
      %p162 = scmp.eq.s32.totalorder %s17, 0
      %p163 = por %p161, %p162
      %p164 = scmp.ne.s32.totalorder %s156, %s158
      %p165 = scmp.eq.s32.totalorder %s22, 1
      %p166 = por %p164, %p165
      %p167 = scmp.ne.s32.totalorder %s158, %s159
      %p168 = scmp.eq.s32.totalorder %s22, 0
      %p169 = por %p167, %p168
      %p170 = scmp.ne.s32.totalorder %s158, %s159
      %p171 = scmp.eq.s32.totalorder %s23, 1
      %p172 = por %p170, %p171
      %p174 = scmp.ne.s32.totalorder %s159, %s173
      %p175 = scmp.eq.s32.totalorder %s23, 0
      %p176 = por %p174, %p175
      %s178 = sadd.s32 %s177, 1
      %p181 = scmp.eq.s32.totalorder %s17, 1
      %p182 = scmp.ne.s32.totalorder %s177, %s179
      %p183 = scmp.eq.s32.totalorder %s17, 0
      %p184 = por %p182, %p183
      %p185 = scmp.ne.s32.totalorder %s177, %s179
      %p186 = scmp.eq.s32.totalorder %s22, 1
      %p187 = por %p185, %p186
      %p188 = scmp.ne.s32.totalorder %s179, %s180
      %p189 = scmp.eq.s32.totalorder %s22, 0
      %p190 = por %p188, %p189
      %p191 = scmp.ne.s32.totalorder %s179, %s180
      %p192 = scmp.eq.s32.totalorder %s23, 1
      %p193 = por %p191, %p192
      %p195 = scmp.ne.s32.totalorder %s180, %s194
      %p196 = scmp.eq.s32.totalorder %s23, 0
      %p197 = por %p195, %p196
      %s198 = ssub.s32 %s17, %s24
      %p199 = scmp.eq.s32.totalorder %s198, 0
      %s201 = sadd.s32 %s200, 1
      %s202 = scalar_select %p199, %s200, %s201
      %p205 = pneg %p199
      %p206 = scmp.eq.s32.totalorder %s17, 1
      %p207 = por %p205, %p206
      %p208 = scmp.ne.s32.totalorder %s200, %s203
      %p209 = scmp.eq.s32.totalorder %s17, 0
      %p210 = por %p208, %p209
      %p211 = scmp.ne.s32.totalorder %s200, %s203
      %p212 = scmp.eq.s32.totalorder %s22, 1
      %p213 = por %p211, %p212
      %p214 = scmp.ne.s32.totalorder %s203, %s204
      %p215 = scmp.eq.s32.totalorder %s22, 0
      %p216 = por %p214, %p215
      %p217 = scmp.ne.s32.totalorder %s203, %s204
      %p218 = scmp.eq.s32.totalorder %s23, 1
      %p219 = por %p217, %p218
      %p221 = scmp.ne.s32.totalorder %s204, %s220
      %p222 = scmp.eq.s32.totalorder %s23, 0
      %p223 = por %p221, %p222
      %p224 = scmp.le.s32.totalorder 1, %s17
      %p225 = scmp.lt.s32.totalorder %s17, 3
      %p226 = pnand %p224, %p225
      %p227 = pneg %p226
      // Predicated region
      $region9: #{tpu_custom_call.1} parent=5 // pred_check
        _
      $region10: #{tpu_custom_call.1} parent=5 // pred_check_branch
        %229 = sbr.rel (%p226) target = $region12
      $region11: #{tpu_custom_call.1} parent=5 // pred_region
        %s230 = ssub.s32 %s17, 1
        // Predicated region
        $region13: #{tpu_custom_call.1} parent=11 // pred_check
          %p231 = pneg %p64
        $region14: #{tpu_custom_call.1} parent=11 // pred_check_branch
          %233 = sbr.rel (%p231) target = $region16
        $region15: #{tpu_custom_call.1} parent=11 // pred_region
          _
        $region16: #{tpu_custom_call.1} parent=11 // pred_fallthru
          _
        // Predicated region
        $region17: #{tpu_custom_call.1} parent=11 // pred_check
          %p234 = pneg %p85
        $region18: #{tpu_custom_call.1} parent=11 // pred_check_branch
          %236 = sbr.rel (%p234) target = $region20
        $region19: #{tpu_custom_call.1} parent=11 // pred_region
          _
        $region20: #{tpu_custom_call.1} parent=11 // pred_fallthru
          _
        // Predicated region
        $region21: #{tpu_custom_call.1} parent=11 // pred_check
          %p237 = pneg %p106
        $region22: #{tpu_custom_call.1} parent=11 // pred_check_branch
          %239 = sbr.rel (%p237) target = $region24
        $region23: #{tpu_custom_call.1} parent=11 // pred_region
          _
        $region24: #{tpu_custom_call.1} parent=11 // pred_fallthru
          _
        // Predicated region
        $region25: #{tpu_custom_call.1} parent=11 // pred_check
          %p240 = pneg %p127
        $region26: #{tpu_custom_call.1} parent=11 // pred_check_branch
          %242 = sbr.rel (%p240) target = $region28
        $region27: #{tpu_custom_call.1} parent=11 // pred_region
          _
        $region28: #{tpu_custom_call.1} parent=11 // pred_fallthru
          _
        // Predicated region
        $region29: #{tpu_custom_call.1} parent=11 // pred_check
          %p243 = pneg %p148
        $region30: #{tpu_custom_call.1} parent=11 // pred_check_branch
          %245 = sbr.rel (%p243) target = $region32
        $region31: #{tpu_custom_call.1} parent=11 // pred_region
          _
        $region32: #{tpu_custom_call.1} parent=11 // pred_fallthru
          _
        // Predicated region
        $region33: #{tpu_custom_call.1} parent=11 // pred_check
          %p246 = pneg %p169
        $region34: #{tpu_custom_call.1} parent=11 // pred_check_branch
          %248 = sbr.rel (%p246) target = $region36
        $region35: #{tpu_custom_call.1} parent=11 // pred_region
          _
        $region36: #{tpu_custom_call.1} parent=11 // pred_fallthru
          _
        // Predicated region
        $region37: #{tpu_custom_call.1} parent=11 // pred_check
          %p249 = pneg %p190
        $region38: #{tpu_custom_call.1} parent=11 // pred_check_branch
          %251 = sbr.rel (%p249) target = $region40
        $region39: #{tpu_custom_call.1} parent=11 // pred_region
          _
        $region40: #{tpu_custom_call.1} parent=11 // pred_fallthru
          _
      $region12: #{tpu_custom_call.1} parent=5 // pred_fallthru
        _
      %p252 = scmp.lt.s32.totalorder %s17, 2
      // Predicated region
      $region41: #{tpu_custom_call.1} parent=5 // pred_check
        %p253 = pneg %p252
      $region42: #{tpu_custom_call.1} parent=5 // pred_check_branch
        %255 = sbr.rel (%p253) target = $region44
      $region43: #{tpu_custom_call.1} parent=5 // pred_region
        // Predicated region
        $region45: #{tpu_custom_call.1} parent=43 // pred_check
          %p256 = pneg %p37
        $region46: #{tpu_custom_call.1} parent=43 // pred_check_branch
          %258 = sbr.rel (%p256) target = $region48
        $region47: #{tpu_custom_call.1} parent=43 // pred_region
          %s259 = smul.u32 4, %s17
          %p260 = scmp.lt.s32.totalorder %s259, 7
          %s261 = scalar_select %p260, %s259, 7
          %s262 = smul.addr %s261, 8
          %s263 = scalar_lea.vmem %s0, %s262
          %s264 = smul.u32 4, %s17
        $region48: #{tpu_custom_call.1} parent=43 // pred_fallthru
          _
      $region44: #{tpu_custom_call.1} parent=5 // pred_fallthru
        _
      %p265 = scmp.le.s32.totalorder 1, %s17
      %p266 = scmp.lt.s32.totalorder %s17, 3
      %p267 = pnand %p265, %p266
      %p268 = pneg %p267
      // Predicated region
      $region49: #{tpu_custom_call.1} parent=5 // pred_check
        _
      $region50: #{tpu_custom_call.1} parent=5 // pred_check_branch
        %270 = sbr.rel (%p267) target = $region52
      $region51: #{tpu_custom_call.1} parent=5 // pred_region
        %s271 = ssub.s32 %s17, 1
        %s272 = smul.u32 4, %s22
        %p273 = scmp.lt.s32.totalorder %s272, 7
        %s274 = scalar_select %p273, %s272, 7
        %s275 = smul.addr %s274, 8
        %s276 = scalar_lea.vmem %s0, %s275
        %p277 = pneg %p43
        %p278 = pneg %p40
        %p279 = pneg %p64
        %p280 = pneg %p61
        %p281 = pneg %p85
        %p282 = pneg %p82
        %p283 = pneg %p106
        %p284 = pneg %p103
        %p285 = pneg %p127
        %p286 = pneg %p124
        %p287 = pneg %p148
        %p288 = pneg %p145
        %p289 = pneg %p169
        %p290 = pneg %p166
        %p291 = pneg %p190
        %p292 = pneg %p187
        %p293 = pneg %p216
        %p294 = pneg %p213
        %s295 = sand.u32 %s203, 1
        %s296 = scalar_lea.sflag [#allocation3], %s295
        %s297 = sand.u32 %s203, 1
        %s298 = scalar_lea.vmem [#allocation2], %s297
        %s299 = smul.u32 4, %s22
        %p300 = scmp.lt.s32.totalorder %s299, 7
        %s301 = scalar_select %p300, %s299, 7
        %s302 = smul.addr %s301, 8
        %s303 = scalar_lea.vmem %s0, %s302
        %s304 = smul.u32 4, %s22
        %v305 = vld [vmem:[%s303] sm:$0xff]
        %v306 = vld [vmem:[%s303 + $0x8] sm:$0xff]
        %v307 = vld [vmem:[%s303 + $0x10] sm:$0xff]
        %v308 = vld [vmem:[%s303 + $0x18] sm:$0xff]
        %v309 = vld [vmem:[%s4] sm:$0x7]
        %v310 = vld [vmem:[%s1] sm:$0xff]
        %v311 = vld [vmem:[%s1 + $0x8] sm:$0xff]
        %v312 = vld [vmem:[%s1 + $0x10] sm:$0xff]
        %v313 = vld [vmem:[%s1 + $0x18] sm:$0xff]
        %v314 = vperm.slane %v309, 0
        %vm315 = vcmask 261120
        %v317 = vsel %vm315, %v305, 0
        %v320 = vsel %vm315, %v306, 0
        %v323 = vsel %vm315, %v307, 0
        %v326 = vsel %vm315, %v308, 0
        %328 = vmatpush.msra.mxu0 0.0
        %329 = vmatpush.msra.mxu0 0.0
        %330 = vmatpush.msra.mxu0 0.0
        %331 = vmatpush.msra.mxu0 0.0
        %332 = vmatpush.msra.mxu0 0.0
        %333 = vmatpush.msra.mxu0 0.0
        %334 = vmatpush.msra.mxu0 0.0
        %335 = vmatpush.msra.mxu0 0.0
        %336 = vmatpush.msra.mxu0 0.0
        %337 = vmatpush.msra.mxu0 0.0
        %338 = vmatpush.msra.mxu0 0.0
        %339 = vmatpush.msra.mxu0 0.0
        %340 = vmatpush.msra.mxu0 %v313
        %341 = vmatpush.msra.mxu0 %v312
        %342 = vmatpush.msra.mxu0 %v311
        %343 = vmatpush.msra.mxu0 %v310
        %344 = vmatmul.f32.gmra.mxu0 %v317
        %v345 = vpop.f32.mrf.mxu0
        %v346 = vadd.f32 %v314, %v345
        %347 = vmatmul.f32.gmra.mxu0 %v320
        %v348 = vpop.f32.mrf.mxu0
        %v349 = vadd.f32 %v314, %v348
        %350 = vmatmul.f32.gmra.mxu0 %v323
        %v351 = vpop.f32.mrf.mxu0
        %v352 = vadd.f32 %v314, %v351
        %353 = vmatmul.f32.gmra.mxu0 %v326
        %v354 = vpop.f32.mrf.mxu0
        %v355 = vadd.f32 %v314, %v354
        %356 = vdwg.mxu0
        %v357 = vmax.f32 %v346, 0.0
        %v358 = vmax.f32 %v349, 0.0
        %v359 = vmax.f32 %v352, 0.0
        %v360 = vmax.f32 %v355, 0.0
        %361 = vadd.xlane.f32.xlu0 %v357
        %v362 = vpop.xlane.xlu0 %361
        %363 = vadd.xlane.f32.xlu0 %v358
        %v364 = vpop.xlane.xlu0 %363
        %365 = vadd.xlane.f32.xlu0 %v359
        %v366 = vpop.xlane.xlu0 %365
        %367 = vadd.xlane.f32.xlu0 %v360
        %v368 = vpop.xlane.xlu0 %367
        %v369 = vrcp.pop 128.0
        %v370 = vmul.f32 128.0, %v369
        %v371 = vsub.f32 1.0, %v370
        %v372 = vmul.f32 %v369, %v371
        %v373 = vadd.f32 %v369, %v372
        %vm374 = vweird.f32 %v369
        %v375 = vsel %vm374, %v369, %v373
        %v376 = vmul.f32 %v362, %v375
        %v377 = vmul.f32 %v364, %v375
        %v378 = vmul.f32 %v366, %v375
        %v379 = vmul.f32 %v368, %v375
        %v380 = vsub.f32 %v357, %v376
        %v381 = vsub.f32 %v358, %v377
        %v382 = vsub.f32 %v359, %v378
        %v383 = vsub.f32 %v360, %v379
        %v384 = vmul.f32 %v380, %v380
        %v385 = vmul.f32 %v381, %v381
        %v386 = vmul.f32 %v382, %v382
        %v387 = vmul.f32 %v383, %v383
        %388 = vadd.xlane.f32.xlu0 %v384
        %v389 = vpop.xlane.xlu0 %388
        %390 = vadd.xlane.f32.xlu0 %v385
        %v391 = vpop.xlane.xlu0 %390
        %392 = vadd.xlane.f32.xlu0 %v386
        %v393 = vpop.xlane.xlu0 %392
        %394 = vadd.xlane.f32.xlu0 %v387
        %v395 = vpop.xlane.xlu0 %394
        %v396 = vmul.f32 %v389, %v375
        %v397 = vmul.f32 %v391, %v375
        %v398 = vmul.f32 %v393, %v375
        %v399 = vmul.f32 %v395, %v375
        %v400 = vadd.f32 %v396, 1e-05
        %v401 = vadd.f32 %v397, 1e-05
        %v402 = vadd.f32 %v398, 1e-05
        %v403 = vadd.f32 %v399, 1e-05
        %v404 = vrsqrt.pop %v400
        %v405 = vmul.f32 %v404, %v400
        %v406 = vmul.f32 %v405, %v404
        %v407 = vmul.f32 0.5, %v406
        %v408 = vsub.f32 1.5, %v407
        %v409 = vmul.f32 %v404, %v408
        %vm410 = vweird.f32 %v400
        %vm411 = vweird.f32 %v404
        %vm412 = vmor %vm410, %vm411
        %v413 = vsel %vm412, %v404, %v409
        %v414 = vrsqrt.pop %v401
        %v415 = vmul.f32 %v414, %v401
        %v416 = vmul.f32 %v415, %v414
        %v417 = vmul.f32 0.5, %v416
        %v418 = vsub.f32 1.5, %v417
        %v419 = vmul.f32 %v414, %v418
        %vm420 = vweird.f32 %v401
        %vm421 = vweird.f32 %v414
        %vm422 = vmor %vm420, %vm421
        %v423 = vsel %vm422, %v414, %v419
        %v424 = vrsqrt.pop %v402
        %v425 = vmul.f32 %v424, %v402
        %v426 = vmul.f32 %v425, %v424
        %v427 = vmul.f32 0.5, %v426
        %v428 = vsub.f32 1.5, %v427
        %v429 = vmul.f32 %v424, %v428
        %vm430 = vweird.f32 %v402
        %vm431 = vweird.f32 %v424
        %vm432 = vmor %vm430, %vm431
        %v433 = vsel %vm432, %v424, %v429
        %v434 = vrsqrt.pop %v403
        %v435 = vmul.f32 %v434, %v403
        %v436 = vmul.f32 %v435, %v434
        %v437 = vmul.f32 0.5, %v436
        %v438 = vsub.f32 1.5, %v437
        %v439 = vmul.f32 %v434, %v438
        %vm440 = vweird.f32 %v403
        %vm441 = vweird.f32 %v434
        %vm442 = vmor %vm440, %vm441
        %v443 = vsel %vm442, %v434, %v439
        %v444 = vmul.f32 %v380, %v413
        %v445 = vmul.f32 %v381, %v423
        %v446 = vmul.f32 %v382, %v433
        %v447 = vmul.f32 %v383, %v443
        %v448 = vperm.slane %v309, 1
        %v449 = vmul.f32 %v444, %v448
        %v450 = vmul.f32 %v445, %v448
        %v451 = vmul.f32 %v446, %v448
        %v452 = vmul.f32 %v447, %v448
        %v453 = vperm.slane %v309, 2
        %v454 = vadd.f32 %v449, %v453
        %v455 = vadd.f32 %v450, %v453
        %v456 = vadd.f32 %v451, %v453
        %v457 = vadd.f32 %v452, %v453
        %v458 = vld [vmem:[%s5] sm:$0x7]
        %v459 = vld [vmem:[%s2] sm:$0xff]
        %v460 = vld [vmem:[%s2 + $0x8] sm:$0xff]
        %v461 = vld [vmem:[%s2 + $0x10] sm:$0xff]
        %v462 = vld [vmem:[%s2 + $0x18] sm:$0xff]
        %v463 = vld [vmem:[%s2 + $0x20] sm:$0xff]
        %v464 = vld [vmem:[%s2 + $0x28] sm:$0xff]
        %v465 = vld [vmem:[%s2 + $0x30] sm:$0xff]
        %v466 = vld [vmem:[%s2 + $0x38] sm:$0xff]
        %v467 = vld [vmem:[%s2 + $0x40] sm:$0xff]
        %v468 = vld [vmem:[%s2 + $0x48] sm:$0xff]
        %v469 = vld [vmem:[%s2 + $0x50] sm:$0xff]
        %v470 = vld [vmem:[%s2 + $0x58] sm:$0xff]
        %v471 = vld [vmem:[%s2 + $0x60] sm:$0xff]
        %v472 = vld [vmem:[%s2 + $0x68] sm:$0xff]
        %v473 = vld [vmem:[%s2 + $0x70] sm:$0xff]
        %v474 = vld [vmem:[%s2 + $0x78] sm:$0xff]
        %v475 = vperm.slane %v458, 0
        %476 = vmatpush.msra.mxu0 %v474
        %477 = vmatpush.msra.mxu0 %v473
        %478 = vmatpush.msra.mxu0 %v472
        %479 = vmatpush.msra.mxu0 %v471
        %480 = vmatpush.msra.mxu0 %v470
        %481 = vmatpush.msra.mxu0 %v469
        %482 = vmatpush.msra.mxu0 %v468
        %483 = vmatpush.msra.mxu0 %v467
        %484 = vmatpush.msra.mxu0 %v466
        %485 = vmatpush.msra.mxu0 %v465
        %486 = vmatpush.msra.mxu0 %v464
        %487 = vmatpush.msra.mxu0 %v463
        %488 = vmatpush.msra.mxu0 %v462
        %489 = vmatpush.msra.mxu0 %v461
        %490 = vmatpush.msra.mxu0 %v460
        %491 = vmatpush.msra.mxu0 %v459
        %492 = vmatmul.f32.gmra.mxu0 %v454
        %v493 = vpop.f32.mrf.mxu0
        %v494 = vadd.f32 %v475, %v493
        %495 = vmatmul.f32.gmra.mxu0 %v455
        %v496 = vpop.f32.mrf.mxu0
        %v497 = vadd.f32 %v475, %v496
        %498 = vmatmul.f32.gmra.mxu0 %v456
        %v499 = vpop.f32.mrf.mxu0
        %v500 = vadd.f32 %v475, %v499
        %501 = vmatmul.f32.gmra.mxu0 %v457
        %v502 = vpop.f32.mrf.mxu0
        %v503 = vadd.f32 %v475, %v502
        %504 = vdwg.mxu0
        %v505 = vmax.f32 %v494, 0.0
        %v506 = vmax.f32 %v497, 0.0
        %v507 = vmax.f32 %v500, 0.0
        %v508 = vmax.f32 %v503, 0.0
        %vm509 = vcmask 523264
        %v510 = vsel %vm509, %v505, 0.0
        %511 = vadd.xlane.f32.xlu0 %v510
        %v512 = vpop.xlane.xlu0 %511
        %v513 = vsel %vm509, %v506, 0.0
        %514 = vadd.xlane.f32.xlu0 %v513
        %v515 = vpop.xlane.xlu0 %514
        %v516 = vsel %vm509, %v507, 0.0
        %517 = vadd.xlane.f32.xlu0 %v516
        %v518 = vpop.xlane.xlu0 %517
        %v519 = vsel %vm509, %v508, 0.0
        %520 = vadd.xlane.f32.xlu0 %v519
        %v521 = vpop.xlane.xlu0 %520
        %v522 = vrcp.pop 64.0
        %v523 = vmul.f32 64.0, %v522
        %v524 = vsub.f32 1.0, %v523
        %v525 = vmul.f32 %v522, %v524
        %v526 = vadd.f32 %v522, %v525
        %vm527 = vweird.f32 %v522
        %v528 = vsel %vm527, %v522, %v526
        %v529 = vmul.f32 %v512, %v528
        %v530 = vmul.f32 %v515, %v528
        %v531 = vmul.f32 %v518, %v528
        %v532 = vmul.f32 %v521, %v528
        %v533 = vsub.f32 %v505, %v529
        %v534 = vsub.f32 %v506, %v530
        %v535 = vsub.f32 %v507, %v531
        %v536 = vsub.f32 %v508, %v532
        %v537 = vmul.f32 %v533, %v533
        %v538 = vmul.f32 %v534, %v534
        %v539 = vmul.f32 %v535, %v535
        %v540 = vmul.f32 %v536, %v536
        %v541 = vsel %vm509, %v537, 0.0
        %542 = vadd.xlane.f32.xlu0 %v541
        %v543 = vpop.xlane.xlu0 %542
        %v544 = vsel %vm509, %v538, 0.0
        %545 = vadd.xlane.f32.xlu0 %v544
        %v546 = vpop.xlane.xlu0 %545
        %v547 = vsel %vm509, %v539, 0.0
        %548 = vadd.xlane.f32.xlu0 %v547
        %v549 = vpop.xlane.xlu0 %548
        %v550 = vsel %vm509, %v540, 0.0
        %551 = vadd.xlane.f32.xlu0 %v550
        %v552 = vpop.xlane.xlu0 %551
        %v553 = vmul.f32 %v543, %v528
        %v554 = vmul.f32 %v546, %v528
        %v555 = vmul.f32 %v549, %v528
        %v556 = vmul.f32 %v552, %v528
        %v557 = vadd.f32 %v553, 1e-05
        %v558 = vadd.f32 %v554, 1e-05
        %v559 = vadd.f32 %v555, 1e-05
        %v560 = vadd.f32 %v556, 1e-05
        %v561 = vrsqrt.pop %v557
        %v562 = vmul.f32 %v561, %v557
        %v563 = vmul.f32 %v562, %v561
        %v564 = vmul.f32 0.5, %v563
        %v565 = vsub.f32 1.5, %v564
        %v566 = vmul.f32 %v561, %v565
        %vm567 = vweird.f32 %v557
        %vm568 = vweird.f32 %v561
        %vm569 = vmor %vm567, %vm568
        %v570 = vsel %vm569, %v561, %v566
        %v571 = vrsqrt.pop %v558
        %v572 = vmul.f32 %v571, %v558
        %v573 = vmul.f32 %v572, %v571
        %v574 = vmul.f32 0.5, %v573
        %v575 = vsub.f32 1.5, %v574
        %v576 = vmul.f32 %v571, %v575
        %vm577 = vweird.f32 %v558
        %vm578 = vweird.f32 %v571
        %vm579 = vmor %vm577, %vm578
        %v580 = vsel %vm579, %v571, %v576
        %v581 = vrsqrt.pop %v559
        %v582 = vmul.f32 %v581, %v559
        %v583 = vmul.f32 %v582, %v581
        %v584 = vmul.f32 0.5, %v583
        %v585 = vsub.f32 1.5, %v584
        %v586 = vmul.f32 %v581, %v585
        %vm587 = vweird.f32 %v559
        %vm588 = vweird.f32 %v581
        %vm589 = vmor %vm587, %vm588
        %v590 = vsel %vm589, %v581, %v586
        %v591 = vrsqrt.pop %v560
        %v592 = vmul.f32 %v591, %v560
        %v593 = vmul.f32 %v592, %v591
        %v594 = vmul.f32 0.5, %v593
        %v595 = vsub.f32 1.5, %v594
        %v596 = vmul.f32 %v591, %v595
        %vm597 = vweird.f32 %v560
        %vm598 = vweird.f32 %v591
        %vm599 = vmor %vm597, %vm598
        %v600 = vsel %vm599, %v591, %v596
        %v601 = vmul.f32 %v533, %v570
        %v602 = vmul.f32 %v534, %v580
        %v603 = vmul.f32 %v535, %v590
        %v604 = vmul.f32 %v536, %v600
        %v605 = vperm.slane %v458, 1
        %v606 = vmul.f32 %v601, %v605
        %v607 = vmul.f32 %v602, %v605
        %v608 = vmul.f32 %v603, %v605
        %v609 = vmul.f32 %v604, %v605
        %v610 = vperm.slane %v458, 2
        %v611 = vadd.f32 %v606, %v610
        %v612 = vadd.f32 %v607, %v610
        %v613 = vadd.f32 %v608, %v610
        %v614 = vadd.f32 %v609, %v610
        %v615 = vld [vmem:[%s6] sm:$0x7]
        %v616 = vld [vmem:[%s3] sm:$0xff]
        %v617 = vld [vmem:[%s3 + $0x8] sm:$0xff]
        %v618 = vld [vmem:[%s3 + $0x10] sm:$0xff]
        %v619 = vld [vmem:[%s3 + $0x18] sm:$0xff]
        %v620 = vld [vmem:[%s3 + $0x20] sm:$0xff]
        %v621 = vld [vmem:[%s3 + $0x28] sm:$0xff]
        %v622 = vld [vmem:[%s3 + $0x30] sm:$0xff]
        %v623 = vld [vmem:[%s3 + $0x38] sm:$0xff]
        %v624 = vperm.slane %v615, 0
        %v626 = vsel %vm509, %v611, 0
        %v629 = vsel %vm509, %v612, 0
        %v632 = vsel %vm509, %v613, 0
        %v635 = vsel %vm509, %v614, 0
        %637 = vmatpush.msra.mxu0 0.0
        %638 = vmatpush.msra.mxu0 0.0
        %639 = vmatpush.msra.mxu0 0.0
        %640 = vmatpush.msra.mxu0 0.0
        %641 = vmatpush.msra.mxu0 0.0
        %642 = vmatpush.msra.mxu0 0.0
        %643 = vmatpush.msra.mxu0 0.0
        %644 = vmatpush.msra.mxu0 0.0
        %645 = vmatpush.msra.mxu0 %v623
        %646 = vmatpush.msra.mxu0 %v622
        %647 = vmatpush.msra.mxu0 %v621
        %648 = vmatpush.msra.mxu0 %v620
        %649 = vmatpush.msra.mxu0 %v619
        %650 = vmatpush.msra.mxu0 %v618
        %651 = vmatpush.msra.mxu0 %v617
        %652 = vmatpush.msra.mxu0 %v616
        %653 = vmatmul.f32.gmra.mxu0 %v626
        %v654 = vpop.f32.mrf.mxu0
        %v655 = vadd.f32 %v624, %v654
        %656 = vmatmul.f32.gmra.mxu0 %v629
        %v657 = vpop.f32.mrf.mxu0
        %v658 = vadd.f32 %v624, %v657
        %659 = vmatmul.f32.gmra.mxu0 %v632
        %v660 = vpop.f32.mrf.mxu0
        %v661 = vadd.f32 %v624, %v660
        %662 = vmatmul.f32.gmra.mxu0 %v635
        %v663 = vpop.f32.mrf.mxu0
        %v664 = vadd.f32 %v624, %v663
        %665 = vdwg.mxu0
        %v666 = vmax.f32 %v655, 0.0
        %v667 = vmax.f32 %v658, 0.0
        %v668 = vmax.f32 %v661, 0.0
        %v669 = vmax.f32 %v664, 0.0
        %v670 = vsel %vm315, %v666, 0.0
        %671 = vadd.xlane.f32.xlu0 %v670
        %v672 = vpop.xlane.xlu0 %671
        %v673 = vsel %vm315, %v667, 0.0
        %674 = vadd.xlane.f32.xlu0 %v673
        %v675 = vpop.xlane.xlu0 %674
        %v676 = vsel %vm315, %v668, 0.0
        %677 = vadd.xlane.f32.xlu0 %v676
        %v678 = vpop.xlane.xlu0 %677
        %v679 = vsel %vm315, %v669, 0.0
        %680 = vadd.xlane.f32.xlu0 %v679
        %v681 = vpop.xlane.xlu0 %680
        %v682 = vrcp.pop 32.0
        %v683 = vmul.f32 32.0, %v682
        %v684 = vsub.f32 1.0, %v683
        %v685 = vmul.f32 %v682, %v684
        %v686 = vadd.f32 %v682, %v685
        %vm687 = vweird.f32 %v682
        %v688 = vsel %vm687, %v682, %v686
        %v689 = vmul.f32 %v672, %v688
        %v690 = vmul.f32 %v675, %v688
        %v691 = vmul.f32 %v678, %v688
        %v692 = vmul.f32 %v681, %v688
        %v693 = vsub.f32 %v666, %v689
        %v694 = vsub.f32 %v667, %v690
        %v695 = vsub.f32 %v668, %v691
        %v696 = vsub.f32 %v669, %v692
        %v697 = vmul.f32 %v693, %v693
        %v698 = vmul.f32 %v694, %v694
        %v699 = vmul.f32 %v695, %v695
        %v700 = vmul.f32 %v696, %v696
        %v701 = vsel %vm315, %v697, 0.0
        %702 = vadd.xlane.f32.xlu0 %v701
        %v703 = vpop.xlane.xlu0 %702
        %v704 = vsel %vm315, %v698, 0.0
        %705 = vadd.xlane.f32.xlu0 %v704
        %v706 = vpop.xlane.xlu0 %705
        %v707 = vsel %vm315, %v699, 0.0
        %708 = vadd.xlane.f32.xlu0 %v707
        %v709 = vpop.xlane.xlu0 %708
        %v710 = vsel %vm315, %v700, 0.0
        %711 = vadd.xlane.f32.xlu0 %v710
        %v712 = vpop.xlane.xlu0 %711
        %v713 = vmul.f32 %v703, %v688
        %v714 = vmul.f32 %v706, %v688
        %v715 = vmul.f32 %v709, %v688
        %v716 = vmul.f32 %v712, %v688
        %v717 = vadd.f32 %v713, 1e-05
        %v718 = vadd.f32 %v714, 1e-05
        %v719 = vadd.f32 %v715, 1e-05
        %v720 = vadd.f32 %v716, 1e-05
        %v721 = vrsqrt.pop %v717
        %v722 = vmul.f32 %v721, %v717
        %v723 = vmul.f32 %v722, %v721
        %v724 = vmul.f32 0.5, %v723
        %v725 = vsub.f32 1.5, %v724
        %v726 = vmul.f32 %v721, %v725
        %vm727 = vweird.f32 %v717
        %vm728 = vweird.f32 %v721
        %vm729 = vmor %vm727, %vm728
        %v730 = vsel %vm729, %v721, %v726
        %v731 = vrsqrt.pop %v718
        %v732 = vmul.f32 %v731, %v718
        %v733 = vmul.f32 %v732, %v731
        %v734 = vmul.f32 0.5, %v733
        %v735 = vsub.f32 1.5, %v734
        %v736 = vmul.f32 %v731, %v735
        %vm737 = vweird.f32 %v718
        %vm738 = vweird.f32 %v731
        %vm739 = vmor %vm737, %vm738
        %v740 = vsel %vm739, %v731, %v736
        %v741 = vrsqrt.pop %v719
        %v742 = vmul.f32 %v741, %v719
        %v743 = vmul.f32 %v742, %v741
        %v744 = vmul.f32 0.5, %v743
        %v745 = vsub.f32 1.5, %v744
        %v746 = vmul.f32 %v741, %v745
        %vm747 = vweird.f32 %v719
        %vm748 = vweird.f32 %v741
        %vm749 = vmor %vm747, %vm748
        %v750 = vsel %vm749, %v741, %v746
        %v751 = vrsqrt.pop %v720
        %v752 = vmul.f32 %v751, %v720
        %v753 = vmul.f32 %v752, %v751
        %v754 = vmul.f32 0.5, %v753
        %v755 = vsub.f32 1.5, %v754
        %v756 = vmul.f32 %v751, %v755
        %vm757 = vweird.f32 %v720
        %vm758 = vweird.f32 %v751
        %vm759 = vmor %vm757, %vm758
        %v760 = vsel %vm759, %v751, %v756
        %v761 = vmul.f32 %v693, %v730
        %v762 = vmul.f32 %v694, %v740
        %v763 = vmul.f32 %v695, %v750
        %v764 = vmul.f32 %v696, %v760
        %v765 = vperm.slane %v615, 1
        %v766 = vmul.f32 %v761, %v765
        %v767 = vmul.f32 %v762, %v765
        %v768 = vmul.f32 %v763, %v765
        %v769 = vmul.f32 %v764, %v765
        %v770 = vperm.slane %v615, 2
        %v771 = vadd.f32 %v766, %v770
        %v772 = vadd.f32 %v767, %v770
        %v773 = vadd.f32 %v768, %v770
        %v774 = vadd.f32 %v769, %v770
        %v775 = vld [vmem:[%s7] sm:$0x1]
        %777 = vset.pattern.permute.xlu0 32
        %778 = vperm.xlu0 %777, %v775
        %v779 = vpop.permute.xlu0 %778
        %v781 = vperm.slane %v779, 0
        %v782 = vsel %vm315, %v775, 0
        %v785 = vsel %vm315, %v771, 0
        %v788 = vsel %vm315, %v772, 0
        %v791 = vsel %vm315, %v773, 0
        %v794 = vsel %vm315, %v774, 0
        %796 = vmatpush.xpose.msra.mxu0 0.0
        %797 = vmatpush.xpose.msra.mxu0 0.0
        %798 = vmatpush.xpose.msra.mxu0 0.0
        %799 = vmatpush.xpose.msra.mxu0 0.0
        %800 = vmatpush.xpose.msra.mxu0 0.0
        %801 = vmatpush.xpose.msra.mxu0 0.0
        %802 = vmatpush.xpose.msra.mxu0 0.0
        %803 = vmatpush.xpose.msra.mxu0 0.0
        %804 = vmatpush.xpose.msra.mxu0 0.0
        %805 = vmatpush.xpose.msra.mxu0 0.0
        %806 = vmatpush.xpose.msra.mxu0 0.0
        %807 = vmatpush.xpose.msra.mxu0 0.0
        %808 = vmatpush.xpose.msra.mxu0 %v794
        %809 = vmatpush.xpose.msra.mxu0 %v791
        %810 = vmatpush.xpose.msra.mxu0 %v788
        %811 = vmatpush.xpose.msra.mxu0 %v785
        %812 = vmatmul.f32.gmra.mxu0 %v782
        %v813 = vpop.f32.mrf.mxu0
        %v814 = vadd.f32 %v781, %v813
        %815 = vdwg.mxu0
        %vm816 = vcmask 253952
        %817 = vst.msk [vmem:[%s298] sm:$0x1] %vm816, %v814
        %s818 = sand.u32 %s203, 1
        %s819 = scalar_lea.sflag [#allocation3], %s818
        %s820 = sand.u32 %s203, 1
        %s821 = scalar_lea.vmem [#allocation2], %s820
        // Predicated region
        $region53: #{tpu_custom_call.1} parent=51 // pred_check
          %p822 = pneg %p213
        $region54: #{tpu_custom_call.1} parent=51 // pred_check_branch
          %824 = sbr.rel (%p822) target = $region56
        $region55: #{tpu_custom_call.1} parent=51 // pred_region
          %826 = vsyncadd %s819, 0
          %s827 = scalar_lea.hbm %s8, %s22
          %s829 = sshll.u32 %s821, 4
          %s830 = int_to_ptr.vmem [resolvable:$true] %s829
          %s831 = sshll.u32 %s827, 4
          %s832 = int_to_ptr.hbm [resolvable:$true] %s831
          %834 = dma.vmem_to_hbm [thread:$0]  %s830, 16, %s832, %s819
        $region56: #{tpu_custom_call.1} parent=51 // pred_fallthru
          _
      $region52: #{tpu_custom_call.1} parent=5 // pred_fallthru
        _
      %p835 = scmp.le.s32.totalorder 2, %s17
      // Predicated region
      $region57: #{tpu_custom_call.1} parent=5 // pred_check
        %p836 = pneg %p835
      $region58: #{tpu_custom_call.1} parent=5 // pred_check_branch
        %838 = sbr.rel (%p836) target = $region60
      $region59: #{tpu_custom_call.1} parent=5 // pred_region
        %s839 = ssub.s32 %s17, 2
        // Predicated region
        $region61: #{tpu_custom_call.1} parent=59 // pred_check
          %p840 = pneg %p219
        $region62: #{tpu_custom_call.1} parent=59 // pred_check_branch
          %842 = sbr.rel (%p840) target = $region64
        $region63: #{tpu_custom_call.1} parent=59 // pred_region
          %s843 = sand.u32 %s204, 1
          %s844 = scalar_lea.sflag [#allocation3], %s843
          %s845 = sand.u32 %s204, 1
          %s846 = scalar_lea.vmem [#allocation2], %s845
          %848 = dma.done %s844, 16
        $region64: #{tpu_custom_call.1} parent=59 // pred_fallthru
          _
      $region60: #{tpu_custom_call.1} parent=5 // pred_fallthru
        _
    $region6: #{tpu_custom_call.1} parent=1 // loop_footer
      %s21 = sadd.s32 1, %s17
    $region7: #{tpu_custom_call.1} parent=1 // loop_footer_branch
      %16 = sbr.rel target = $region3
    $region8: #{tpu_custom_call.1} parent=1 // loop_exit
      _
    %849 = vsyncpa [#allocation3], 1
    %s850 = scalar_lea.sflag [#allocation3], 1
    %851 = vsyncpa %s850, 1

</llo_original>
